<compile_context>
chip_gen: v5e
topology: v5e:2x2
jax: 0.10.0
libtpu: 0.0.40
codegen_flags: <defaults>
</compile_context>

<pallas_src>
import jax
import jax.numpy as jnp
from jax import lax
from jax.experimental import pallas as pl
from jax.experimental.pallas import tpu as pltpu


def _wce_kernel(logits_ref, rowdata_ref, loss_out_ref, w_out_ref,
                acc_loss_ref, acc_w_ref):
    """Weighted cross-entropy partial sums, accumulated over the row-tile axis."""
    i = pl.program_id(1)

    @pl.when(i == 0)
    def _():
        acc_loss_ref[...] = jnp.zeros_like(acc_loss_ref)
        acc_w_ref[...] = jnp.zeros_like(acc_w_ref)

    logits = logits_ref[...]                                   # (TN, Cp) native dtype
    labels = rowdata_ref[:, 0:1].astype(jnp.int32)             # (TN, 1)  int32 (-1 = pad row)
    w_y = rowdata_ref[:, 1:2]                                  # (TN, 1)  f32, 0 on pad rows

    tn, cp = logits.shape
    class_ids = lax.broadcasted_iota(jnp.int32, (tn, cp), 1)
    onehot = class_ids == labels                               # (TN, Cp) bool

    # Row max in the native dtype (exact for bf16/f32); f32 only inside exp/log.
    m = jnp.max(logits, axis=-1, keepdims=True)                # (TN, 1)
    sumexp = jnp.sum(jnp.exp((logits - m).astype(jnp.float32)),
                     axis=-1, keepdims=True)                   # (TN, 1) f32
    lse = m.astype(jnp.float32) + jnp.log(sumexp)              # (TN, 1) f32

    # One-hot "gather" of the label logit: exactly one non-zero per row, so the
    # native-dtype select + lane-sum is exact. Padded rows (label -1) give 0.
    x_y = jnp.sum(jnp.where(onehot, logits, 0), axis=-1,
                  keepdims=True).astype(jnp.float32)           # (TN, 1) f32

    contrib = w_y * (lse - x_y)                                # (TN, 1); 0 on pad rows

    # Row-axis collapse to (1,1); the only cross-sublane reduce per step is the
    # final single-vreg fold. Scalar division is deferred to the wrapper.
    acc_loss_ref[...] += jnp.sum(contrib, axis=0, keepdims=True)
    acc_w_ref[...] += jnp.sum(w_y, axis=0, keepdims=True)

    @pl.when(i == pl.num_programs(1) - 1)
    def _():
        loss_out_ref[...] = acc_loss_ref[...].reshape(1, 1, 1)
        w_out_ref[...] = acc_w_ref[...].reshape(1, 1, 1)


def _phys_vmem_bytes():
    """Physical per-core VMEM; conservative fallback = 64 MiB (v7x per-TC)."""
    try:
        info = pltpu.get_tpu_info()
        v = getattr(info, "vmem_capacity_bytes", None)
        if v:
            return int(v)
    except Exception:
        pass
    return 64 * 1024 * 1024


def _num_tensorcores():
    """2 TensorCores per chip on v7x, 1 on v5e/v6e."""
    try:
        kind = jax.devices()[0].device_kind.lower()
    except Exception:
        return 1
    return 2 if "7" in kind else 1


def _dim_semantics(num_splits):
    if num_splits > 1:
        # Make the split actually land on both TensorCores (v7x); plain "parallel"
        # may not shard across cores. String fallback for older jax.
        return (getattr(pltpu, "CORE_PARALLEL", "parallel"), "arbitrary")
    return ("arbitrary", "arbitrary")


def weighted_cross_entropy(preds, labels, class_weights, tile_n=None, num_splits=None):
    """preds: (N, C) float; labels: (N,) int; class_weights: (C,) float."""
    n, c = preds.shape
    dtype = preds.dtype
    isz = jnp.dtype(dtype).itemsize

    # Lane-pad the class axis to a multiple of 128 (lane-dense vregs / full DMA lines).
    c_pad = ((c + 127) // 128) * 128

    if num_splits is None:
        num_splits = _num_tensorcores()
    num_splits = max(1, int(num_splits))

    phys_vmem = _phys_vmem_bytes()
    # Explicit scoped-VMEM limit; leave >=25% (>=16 MiB) headroom for compiler temps.
    vmem_limit = int(phys_vmem - max(phys_vmem // 4, 16 * 1024 * 1024))

    if tile_n is None:
        # Honest per-row VMEM footprint (bytes), everything that scales with tile_n:
        #   2x double-buffered logits rows             : 2 * c_pad * isz
        #   2x double-buffered rowdata rows            : 2 * 512   ((TN,2) lane-pads to 128)
        #   full-width f32 temps (exp / compare chain) : 2 * c_pad * 4
        #   (TN,1) f32 column temps (m/lse/x_y/contrib): 4 * 512   (lane-padded)
        per_row = 2 * c_pad * isz + 2 * 512 + 2 * c_pad * 4 + 4 * 512
        tile_budget = vmem_limit - 2 * 1024 * 1024          # scratch/outputs/semaphores
        tile_n = tile_budget // per_row
        # Single logits DMA blocks beyond ~8 MiB have diminishing returns.
        tile_n = min(tile_n, (8 * 1024 * 1024) // (c_pad * isz))

    rows_per_split = -(-n // num_splits)                    # ceil
    rows_per_split = ((rows_per_split + 7) // 8) * 8
    tile_n = int(min(int(tile_n), rows_per_split))
    tile_n = max(8, (tile_n // 8) * 8)

    chunk = num_splits * tile_n
    n_pad = ((n + chunk - 1) // chunk) * chunk
    tiles_per_split = (n_pad // tile_n) // num_splits

    # Class-axis padding: dtype-aware finite minimum (fp16-safe) so exp underflows
    # to 0 and padded columns never win the row max.
    if jnp.issubdtype(dtype, jnp.floating):
        neg_pad = float(jnp.finfo(dtype).min)
    else:
        neg_pad = float(jnp.finfo(jnp.float32).min)

    logits = jnp.pad(preds, ((0, n_pad - n), (0, c_pad - c)), constant_values=neg_pad)

    labels_i32 = labels.astype(jnp.int32)
    # TODO(synk): torch.nn.CrossEntropyLoss raises on out-of-range labels; here the
    # O(N) wrapper gather clips them, so such labels are assumed not to occur.
    w_y = class_weights.astype(jnp.float32)[labels_i32]                     # (N,)
    labels_f = jnp.pad(labels_i32.astype(jnp.float32), (0, n_pad - n),
                       constant_values=-1.0)
    w_y_p = jnp.pad(w_y, (0, n_pad - n))                                    # zeros on pad rows
    rowdata = jnp.stack([labels_f, w_y_p], axis=1)                          # (n_pad, 2) f32

    loss_sums, w_sums = pl.pallas_call(
        _wce_kernel,
        out_shape=(
            jax.ShapeDtypeStruct((num_splits, 1, 1), jnp.float32),
            jax.ShapeDtypeStruct((num_splits, 1, 1), jnp.float32),
        ),
        grid_spec=pltpu.PrefetchScalarGridSpec(
            num_scalar_prefetch=0,
            grid=(num_splits, tiles_per_split),
            in_specs=[
                # Logits streamed in native dtype; f32 math only inside the kernel.
                pl.BlockSpec((tile_n, c_pad),
                             lambda s, i: (s * tiles_per_split + i, 0)),
                # Packed per-row side data (label, pre-gathered weight).
                pl.BlockSpec((tile_n, 2),
                             lambda s, i: (s * tiles_per_split + i, 0)),
            ],
            out_specs=[
                pl.BlockSpec((1, 1, 1), lambda s, i: (s, 0, 0)),
                pl.BlockSpec((1, 1, 1), lambda s, i: (s, 0, 0)),
            ],
            scratch_shapes=[
                pltpu.VMEM((1, 1), jnp.float32),    # running loss sum
                pltpu.VMEM((1, 1), jnp.float32),    # running weight sum
            ],
        ),
        compiler_params=pltpu.CompilerParams(
            dimension_semantics=_dim_semantics(num_splits),
            vmem_limit_bytes=vmem_limit),
    )(logits, rowdata)

    # Combine per-core partials; single division in the wrapper.
    return jnp.sum(loss_sums) / jnp.sum(w_sums)


class CrossEntropyMultiRankPallas:
    """JAX/Pallas port of CrossEntropyMultiRank: one weighted CE loss per tax rank."""

    def __init__(self, tax_ranks, num_classes, class_weights=None):
        self.weight = {}
        for tax_rank in tax_ranks:
            c = num_classes[tax_rank]
            if class_weights is not None:
                w = jnp.asarray(list(class_weights[tax_rank].values()),
                                dtype=jnp.float32)
            else:
                w = jnp.ones((c,), dtype=jnp.float32)
            self.weight[tax_rank] = w

    def __call__(self, preds, labels, tax_rank):
        return weighted_cross_entropy(preds, labels, self.weight[tax_rank])


def _reference_wce(preds, labels, w):
    """Plain-JAX reference of torch CrossEntropyLoss(weight=w, reduction='mean')."""
    logp = jax.nn.log_softmax(preds.astype(jnp.float32), axis=-1)
    nll = -jnp.take_along_axis(logp, labels[:, None].astype(jnp.int32), axis=-1)[:, 0]
    wy = w[labels]
    return jnp.sum(wy * nll) / jnp.sum(wy)


if __name__ == "__main__":
    key = jax.random.PRNGKey(0)

    tax_ranks = ["genus", "species"]
    num_classes = {"genus": 32, "species": 64}
    batch = 16

    # Deterministic synthetic per-class weights (mimics class_weights dict-of-dicts).
    class_weights = {
        r: {c: 0.5 + 0.05 * c for c in range(num_classes[r])} for r in tax_ranks
    }

    loss_mod = CrossEntropyMultiRankPallas(tax_ranks, num_classes, class_weights)

    ok = True
    for r in tax_ranks:
        key, k1, k2 = jax.random.split(key, 3)
        preds = jax.random.normal(k1, (batch, num_classes[r]), dtype=jnp.float32)
        labels = jax.random.randint(k2, (batch,), 0, num_classes[r], dtype=jnp.int32)

        loss = loss_mod(preds, labels, r)
        loss = jax.block_until_ready(loss)

        ref = _reference_wce(preds, labels, loss_mod.weight[r])
        ok = ok and bool(jnp.allclose(loss, ref, rtol=1e-5, atol=1e-5))

    if ok:
        print("KERNEL_OK")
    else:
        print("KERNEL_MISMATCH")
</pallas_src>

<mosaic_0001>
module attributes {stable_mosaic.version = 11 : i64} {
  func.func @_wce_kernel(%arg0: i32, %arg1: i32, %arg2: memref<16x128xf32, #tpu.memory_space<vmem>>, %arg3: memref<16x2xf32, #tpu.memory_space<vmem>>, %arg4: memref<1x1x1xf32, #tpu.memory_space<vmem>>, %arg5: memref<1x1x1xf32, #tpu.memory_space<vmem>>, %arg6: memref<1x1xf32, #tpu.memory_space<vmem>>, %arg7: memref<1x1xf32, #tpu.memory_space<vmem>>) attributes {dimension_semantics = [#tpu.dimension_semantics<arbitrary>, #tpu.dimension_semantics<arbitrary>], iteration_bounds = array<i64: 1, 1>, scalar_prefetch = 0 : i64, scratch_operands = 2 : i64, tpu.core_type = #tpu.core_type<tc>, window_params = [{transform_indices = @transform_0, window_bounds = array<i64: 16, 128>}, {transform_indices = @transform_1, window_bounds = array<i64: 16, 2>}, {transform_indices = @transform_2, window_bounds = array<i64: 1, 1, 1>}, {transform_indices = @transform_3, window_bounds = array<i64: 1, 1, 1>}]} {
    %c0_i32 = arith.constant 0 : i32
    %0 = arith.cmpi eq, %arg1, %c0_i32 : i32
    %1 = arith.extui %0 : i1 to i32
    %c0_i32_0 = arith.constant 0 : i32
    %2 = arith.cmpi ne, %1, %c0_i32_0 : i32
    scf.if %2 {
      %cst_20 = arith.constant 0.000000e+00 : f32
      %39 = vector.broadcast %cst_20 : f32 to vector<1x1xf32>
      %c0_21 = arith.constant 0 : index
      %c0_22 = arith.constant 0 : index
      %40 = vector.load %arg6[%c0_21, %c0_22] : memref<1x1xf32, #tpu.memory_space<vmem>>, vector<1x1xf32>
      tpu.vector_store %arg6[%c0_21, %c0_22], %39 {strides = array<i32>} : memref<1x1xf32, #tpu.memory_space<vmem>>, vector<1x1xf32>,
      %cst_23 = arith.constant 0.000000e+00 : f32
      %41 = vector.broadcast %cst_23 : f32 to vector<1x1xf32>
      %c0_24 = arith.constant 0 : index
      %c0_25 = arith.constant 0 : index
      %42 = vector.load %arg7[%c0_24, %c0_25] : memref<1x1xf32, #tpu.memory_space<vmem>>, vector<1x1xf32>
      tpu.vector_store %arg7[%c0_24, %c0_25], %41 {strides = array<i32>} : memref<1x1xf32, #tpu.memory_space<vmem>>, vector<1x1xf32>,
    } else {
    }
    %c0 = arith.constant 0 : index
    %c0_1 = arith.constant 0 : index
    %3 = vector.load %arg2[%c0, %c0_1] : memref<16x128xf32, #tpu.memory_space<vmem>>, vector<16x128xf32>
    %c0_2 = arith.constant 0 : index
    %c0_3 = arith.constant 0 : index
    %4 = vector.load %arg3[%c0_2, %c0_3] : memref<16x2xf32, #tpu.memory_space<vmem>>, vector<16x1xf32>
    %5 = arith.fptosi %4 : vector<16x1xf32> to vector<16x1xi32>
    %c0_4 = arith.constant 0 : index
    %c1 = arith.constant 1 : index
    %6 = vector.load %arg3[%c0_4, %c1] : memref<16x2xf32, #tpu.memory_space<vmem>>, vector<16x1xf32>
    %7 = tpu.iota {dimensions = array<i32: 1>} : vector<16x128xi32>
    %8 = vector.broadcast %5 : vector<16x1xi32> to vector<16x128xi32>
    %9 = arith.cmpi eq, %7, %8 : vector<16x128xi32>
    %cst = arith.constant dense<0xFF800000> : vector<16xf32>
    %10 = vector.multi_reduction <maximumf>, %3, %cst [1] : vector<16x128xf32> to vector<16xf32>
    %11 = vector.shape_cast %10 : vector<16xf32> to vector<16x1xf32>
    %12 = vector.broadcast %11 : vector<16x1xf32> to vector<16x128xf32>
    %13 = arith.subf %3, %12 : vector<16x128xf32>
    %14 = math.exp %13 : vector<16x128xf32>
    %cst_5 = arith.constant dense<0.000000e+00> : vector<16xf32>
    %15 = vector.multi_reduction <add>, %14, %cst_5 [1] : vector<16x128xf32> to vector<16xf32>
    %16 = vector.shape_cast %15 : vector<16xf32> to vector<16x1xf32>
    %17 = math.log %16 : vector<16x1xf32>
    %18 = arith.addf %11, %17 : vector<16x1xf32>
    %c0_i32_6 = arith.constant 0 : i32
    %19 = arith.sitofp %c0_i32_6 : i32 to f32
    %20 = vector.broadcast %19 : f32 to vector<16x128xf32>
    %21 = arith.select %9, %3, %20 : vector<16x128xi1>, vector<16x128xf32>
    %cst_7 = arith.constant dense<0.000000e+00> : vector<16xf32>
    %22 = vector.multi_reduction <add>, %21, %cst_7 [1] : vector<16x128xf32> to vector<16xf32>
    %23 = vector.shape_cast %22 : vector<16xf32> to vector<16x1xf32>
    %24 = arith.subf %18, %23 : vector<16x1xf32>
    %25 = arith.mulf %6, %24 : vector<16x1xf32>
    %c0_8 = arith.constant 0 : index
    %c0_9 = arith.constant 0 : index
    %26 = vector.load %arg6[%c0_8, %c0_9] : memref<1x1xf32, #tpu.memory_space<vmem>>, vector<1x1xf32>
    %cst_10 = arith.constant dense<0.000000e+00> : vector<1xf32>
    %27 = vector.multi_reduction <add>, %25, %cst_10 [0] : vector<16x1xf32> to vector<1xf32>
    %28 = vector.shape_cast %27 : vector<1xf32> to vector<1x1xf32>
    %29 = arith.addf %26, %28 : vector<1x1xf32>
    %c0_11 = arith.constant 0 : index
    %c0_12 = arith.constant 0 : index
    %30 = vector.load %arg6[%c0_11, %c0_12] : memref<1x1xf32, #tpu.memory_space<vmem>>, vector<1x1xf32>
    tpu.vector_store %arg6[%c0_11, %c0_12], %29 {strides = array<i32>} : memref<1x1xf32, #tpu.memory_space<vmem>>, vector<1x1xf32>,
    %c0_13 = arith.constant 0 : index
    %c0_14 = arith.constant 0 : index
    %31 = vector.load %arg7[%c0_13, %c0_14] : memref<1x1xf32, #tpu.memory_space<vmem>>, vector<1x1xf32>
    %cst_15 = arith.constant dense<0.000000e+00> : vector<1xf32>
    %32 = vector.multi_reduction <add>, %6, %cst_15 [0] : vector<16x1xf32> to vector<1xf32>
    %33 = vector.shape_cast %32 : vector<1xf32> to vector<1x1xf32>
    %34 = arith.addf %31, %33 : vector<1x1xf32>
    %c0_16 = arith.constant 0 : index
    %c0_17 = arith.constant 0 : index
    %35 = vector.load %arg7[%c0_16, %c0_17] : memref<1x1xf32, #tpu.memory_space<vmem>>, vector<1x1xf32>
    tpu.vector_store %arg7[%c0_16, %c0_17], %34 {strides = array<i32>} : memref<1x1xf32, #tpu.memory_space<vmem>>, vector<1x1xf32>,
    %c0_i32_18 = arith.constant 0 : i32
    %36 = arith.cmpi eq, %arg1, %c0_i32_18 : i32
    %37 = arith.extui %36 : i1 to i32
    %c0_i32_19 = arith.constant 0 : i32
    %38 = arith.cmpi ne, %37, %c0_i32_19 : i32
    scf.if %38 {
      %c0_20 = arith.constant 0 : index
      %c0_21 = arith.constant 0 : index
      %39 = vector.load %arg6[%c0_20, %c0_21] : memref<1x1xf32, #tpu.memory_space<vmem>>, vector<1x1xf32>
      %40 = vector.shape_cast %39 : vector<1x1xf32> to vector<1x1x1xf32>
      %c0_22 = arith.constant 0 : index
      %c0_23 = arith.constant 0 : index
      %c0_24 = arith.constant 0 : index
      %41 = vector.load %arg4[%c0_22, %c0_23, %c0_24] : memref<1x1x1xf32, #tpu.memory_space<vmem>>, vector<1x1x1xf32>
      tpu.vector_store %arg4[%c0_22, %c0_23, %c0_24], %40 {strides = array<i32>} : memref<1x1x1xf32, #tpu.memory_space<vmem>>, vector<1x1x1xf32>,
      %c0_25 = arith.constant 0 : index
      %c0_26 = arith.constant 0 : index
      %42 = vector.load %arg7[%c0_25, %c0_26] : memref<1x1xf32, #tpu.memory_space<vmem>>, vector<1x1xf32>
      %43 = vector.shape_cast %42 : vector<1x1xf32> to vector<1x1x1xf32>
      %c0_27 = arith.constant 0 : index
      %c0_28 = arith.constant 0 : index
      %c0_29 = arith.constant 0 : index
      %44 = vector.load %arg5[%c0_27, %c0_28, %c0_29] : memref<1x1x1xf32, #tpu.memory_space<vmem>>, vector<1x1x1xf32>
      tpu.vector_store %arg5[%c0_27, %c0_28, %c0_29], %43 {strides = array<i32>} : memref<1x1x1xf32, #tpu.memory_space<vmem>>, vector<1x1x1xf32>,
    } else {
    }
    return
  }
  func.func @transform_0(%arg0: i32, %arg1: i32) -> (i32, i32) {
    %c1_i32 = arith.constant 1 : i32
    %0 = arith.muli %arg0, %c1_i32 : i32
    %1 = arith.addi %0, %arg1 : i32
    %c0_i32 = arith.constant 0 : i32
    %c0_i32_0 = arith.constant 0 : i32
    return %1, %c0_i32 : i32, i32
  }
  func.func @transform_1(%arg0: i32, %arg1: i32) -> (i32, i32) {
    %c1_i32 = arith.constant 1 : i32
    %0 = arith.muli %arg0, %c1_i32 : i32
    %1 = arith.addi %0, %arg1 : i32
    %c0_i32 = arith.constant 0 : i32
    %c0_i32_0 = arith.constant 0 : i32
    return %1, %c0_i32 : i32, i32
  }
  func.func @transform_2(%arg0: i32, %arg1: i32) -> (i32, i32, i32) {
    %c0_i32 = arith.constant 0 : i32
    %c0_i32_0 = arith.constant 0 : i32
    %c0_i32_1 = arith.constant 0 : i32
    return %arg0, %c0_i32, %c0_i32_0 : i32, i32, i32
  }
  func.func @transform_3(%arg0: i32, %arg1: i32) -> (i32, i32, i32) {
    %c0_i32 = arith.constant 0 : i32
    %c0_i32_0 = arith.constant 0 : i32
    %c0_i32_1 = arith.constant 0 : i32
    return %arg0, %c0_i32, %c0_i32_0 : i32, i32, i32
  }
}

</mosaic_0001>

<llo_original>
// kernel: tpu_custom_call.1
$region0: #{tpu_custom_call.1}
  #allocation0 [shape = 'u32[]', space=smem, size = 0x4, offset = 0x4, fixed_abs, tag = 'smem constant byte address 0x4 - core index']
  #allocation1 [shape = 'u32[72,128]{1,0:T(1,128)}', space=vmem, size = 0x9000, scoped, tag = 'internal scratch']
  #allocation2 [shape = 'f32[1,1]{1,0:T(1,128)}', space=vmem, size = 0x200, scoped, tag = 'scratch operand']
  #allocation3 [shape = 'f32[1,1]{1,0:T(1,128)}', space=vmem, size = 0x200, scoped, tag = 'scratch operand']
  %s0 = inlined_call_operand.vmem [shape: f32[16,128], index: 0, kind: input, shape index: {}]
  %s1 = inlined_call_operand.vmem [shape: f32[16,2], index: 1, kind: input, shape index: {}]
  %s2 = inlined_call_operand.hbm [shape: f32[1,1,1], index: 2, kind: output, shape index: {0}]
  %s3 = inlined_call_operand.hbm [shape: f32[1,1,1], index: 3, kind: output, shape index: {1}]
  %4 = xla_tuple %s2, %s3
  %s5 = sld [smem:[#allocation0]]
  $region34: #{tpu_custom_call.1} parent=0
    _
  %s7 = ssub.s32 1, %s5
  %s8 = scalar_select 0, %s7, %s5
  $region1: #{tpu_custom_call.1} parent=0
    #allocation4 [shape = 'u8[512]{0}', space=vmem, size = 0x400, scoped, tag = 'output window, operand 0, single buffered']
    #allocation5 [shape = 's32[1]{0}', space=sflag, size = 0x4, scoped, tag = 'scoped memory for tpu_custom_call.1']
    #allocation6 [shape = 'u8[512]{0}', space=vmem, size = 0x400, scoped, tag = 'output window, operand 1, single buffered']
    #allocation7 [shape = 's32[1]{0}', space=sflag, size = 0x4, scoped, tag = 'scoped memory for tpu_custom_call.1']
    %9 = vsyncpa [#allocation5], 0
    %10 = vsyncpa [#allocation7], 0
    // Predicated region
    $region2: #{tpu_custom_call.1} parent=1 // pred_check
      _
    $region3: #{tpu_custom_call.1} parent=1 // pred_check_branch
      %12 = sbr.rel (0) target = $region5
    $region4: #{tpu_custom_call.1} parent=1 // pred_region
      %s13 = sadd.s32 0, 0
      %s14 = smul.u32 2, %s13
      %p15 = scmp.lt.s32.totalorder %s14, 1
      %s16 = scalar_select %p15, %s14, 1
      %s17 = smul.addr %s16, 8
      %s18 = scalar_lea.vmem %s0, %s17
      %s19 = sadd.s32 0, 0
      %s20 = smul.u32 2, %s19
    $region5: #{tpu_custom_call.1} parent=1 // pred_fallthru
      _
    // Predicated region
    $region6: #{tpu_custom_call.1} parent=1 // pred_check
      _
    $region7: #{tpu_custom_call.1} parent=1 // pred_check_branch
      %22 = sbr.rel (0) target = $region9
    $region8: #{tpu_custom_call.1} parent=1 // pred_region
      %s23 = sadd.s32 0, 0
      %s24 = smul.u32 2, %s23
      %p25 = scmp.lt.s32.totalorder %s24, 1
      %s26 = scalar_select %p25, %s24, 1
      %s27 = smul.addr %s26, 8
      %s28 = scalar_lea.vmem %s1, %s27
      %s29 = sadd.s32 0, 0
      %s30 = smul.u32 2, %s29
    $region9: #{tpu_custom_call.1} parent=1 // pred_fallthru
      _
    %s31 = sadd.s32 0, 0
    %s32 = smul.u32 2, %s31
    %p33 = scmp.lt.s32.totalorder %s32, 1
    %s34 = scalar_select %p33, %s32, 1
    %s35 = smul.addr %s34, 8
    %s36 = scalar_lea.vmem %s0, %s35
    %s37 = sadd.s32 0, 0
    %s38 = smul.u32 2, %s37
    %p39 = scmp.lt.s32.totalorder %s38, 1
    %s40 = scalar_select %p39, %s38, 1
    %s41 = smul.addr %s40, 8
    %s42 = scalar_lea.vmem %s1, %s41
    %s43 = sadd.s32 0, 0
    %s44 = smul.u32 2, %s43
    %p45 = scmp.lt.s32.totalorder %s44, 1
    %s46 = scalar_select %p45, %s44, 1
    %s47 = smul.addr %s46, 8
    %s48 = scalar_lea.vmem %s0, %s47
    %s49 = sadd.s32 0, 0
    %s50 = smul.u32 2, %s49
    %s51 = sadd.s32 0, 0
    %s52 = smul.u32 2, %s51
    %p53 = scmp.lt.s32.totalorder %s52, 1
    %s54 = scalar_select %p53, %s52, 1
    %s55 = smul.addr %s54, 8
    %s56 = scalar_lea.vmem %s1, %s55
    %s57 = sadd.s32 0, 0
    %s58 = smul.u32 2, %s57
    %p59 = scmp.eq.s32.totalorder 0, 0
    // Predicated region
    $region10: #{tpu_custom_call.1} parent=1 // pred_check
      %p60 = pneg %p59
    $region11: #{tpu_custom_call.1} parent=1 // pred_check_branch
      %62 = sbr.rel (%p60) target = $region13
    $region12: #{tpu_custom_call.1} parent=1 // pred_region
      %vm63 = vcmask 0
      %64 = vst.msk [vmem:[#allocation2] sm:$0x1] %vm63, 0.0
      %65 = vst.msk [vmem:[#allocation3] sm:$0x1] %vm63, 0.0
    $region13: #{tpu_custom_call.1} parent=1 // pred_fallthru
      _
    %v66 = vld [vmem:[%s48] sm:$0xff]
    %v67 = vld [vmem:[%s48 + $0x8] sm:$0xff]
    %v68 = vld [vmem:[%s56] sm:$0xff]
    %v69 = vld [vmem:[%s56 + $0x8] sm:$0xff]
    %v70 = vcvt.f32.s32.to.zero.pseudo %v68
    %v71 = vcvt.f32.s32.to.zero.pseudo %v69
    %v72 = vlaneseq
    %v73 = vand.u32 %v72, 127
    %74 = vset.pattern.permute.xlu0 0
    %75 = vperm.xlu0 %74, %v70
    %v76 = vpop.permute.xlu0 %75
    %77 = vset.pattern.permute.xlu0 0
    %78 = vperm.xlu0 %77, %v71
    %v79 = vpop.permute.xlu0 %78
    %vm80 = vcmp.eq.s32.totalorder %v73, %v76
    %vm81 = vcmp.eq.s32.totalorder %v73, %v79
    %82 = vmax.xlane.f32.xlu0 %v66
    %v83 = vpop.xlane.xlu0 %82
    %84 = vmax.xlane.f32.xlu0 %v67
    %v85 = vpop.xlane.xlu0 %84
    %v86 = vsub.f32 %v66, %v83
    %v87 = vsub.f32 %v67, %v85
    %v88 = vmul.f32 %v86, 1.442695
    %v89 = vpow.pop %v88
    %v90 = vmul.f32 %v87, 1.442695
    %v91 = vpow.pop %v90
    %92 = vadd.xlane.f32.xlu0 %v89
    %v93 = vpop.xlane.xlu0 %92
    %94 = vadd.xlane.f32.xlu0 %v91
    %v95 = vpop.xlane.xlu0 %94
    %v96 = vlog2.pop %v93
    %v97 = vmul.f32 %v96, 0.6931472
    %v98 = vlog2.pop %v95
    %v99 = vmul.f32 %v98, 0.6931472
    %v100 = vadd.f32 %v83, %v97
    %v101 = vadd.f32 %v85, %v99
    %v102 = vsel %vm80, %v66, 0.0
    %v103 = vsel %vm81, %v67, 0.0
    %104 = vadd.xlane.f32.xlu0 %v102
    %v105 = vpop.xlane.xlu0 %104
    %106 = vadd.xlane.f32.xlu0 %v103
    %v107 = vpop.xlane.xlu0 %106
    %v108 = vsub.f32 %v100, %v105
    %v109 = vsub.f32 %v101, %v107
    %v110 = vmul.f32 %v68, %v108
    %v111 = vmul.f32 %v69, %v109
    %v112 = vld [vmem:[#allocation2] sm:$0x1]
    %vm113 = vcmask 15368
    %v114 = vsel %vm113, %v110, 0.0
    %v115 = vsel %vm113, %v111, 0.0
    %v116 = vadd.f32 %v114, %v115
    %v117 = vrot.slane %v116, 4
    %v118 = vadd.f32 %v116, %v117
    %v119 = vrot.slane %v118, 2
    %v120 = vadd.f32 %v118, %v119
    %v121 = vrot.slane %v120, 1
    %v122 = vadd.f32 %v120, %v121
    %124 = vrot.lane.b32.xlu0 %v122, 127
    %v125 = vpop.permute.xlu0 %124
    %v127 = vadd.f32 %v112, %v125
    %vm128 = vcmask 0
    %129 = vst.msk [vmem:[#allocation2] sm:$0x1] %vm128, %v127
    %v130 = vld [vmem:[#allocation3] sm:$0x1]
    %v131 = vsel %vm113, %v68, 0.0
    %v132 = vsel %vm113, %v69, 0.0
    %v133 = vadd.f32 %v131, %v132
    %v134 = vrot.slane %v133, 4
    %v135 = vadd.f32 %v133, %v134
    %v136 = vrot.slane %v135, 2
    %v137 = vadd.f32 %v135, %v136
    %v138 = vrot.slane %v137, 1
    %v139 = vadd.f32 %v137, %v138
    %141 = vrot.lane.b32.xlu0 %v139, 127
    %v142 = vpop.permute.xlu0 %141
    %v144 = vadd.f32 %v130, %v142
    %145 = vst.msk [vmem:[#allocation3] sm:$0x1] %vm128, %v144
    // Predicated region
    $region14: #{tpu_custom_call.1} parent=1 // pred_check
      %p146 = pneg %p59
    $region15: #{tpu_custom_call.1} parent=1 // pred_check_branch
      %148 = sbr.rel (%p146) target = $region17
    $region16: #{tpu_custom_call.1} parent=1 // pred_region
      %v149 = vld [vmem:[#allocation2] sm:$0x1]
      %150 = vst.msk [vmem:[#allocation4] sm:$0x1] %vm128, %v149
      %v151 = vld [vmem:[#allocation3] sm:$0x1]
      %152 = vst.msk [vmem:[#allocation6] sm:$0x1] %vm128, %v151
    $region17: #{tpu_custom_call.1} parent=1 // pred_fallthru
      _
    // Predicated region
    $region18: #{tpu_custom_call.1} parent=1 // pred_check
      _
    $region19: #{tpu_custom_call.1} parent=1 // pred_check_branch
      %154 = sbr.rel (0) target = $region21
    $region20: #{tpu_custom_call.1} parent=1 // pred_region
      %156 = vsyncadd [#allocation5], 0
      %s158 = sshll.u32 [#allocation4], 4
      %s159 = int_to_ptr.vmem [resolvable:$true] %s158
      %s160 = sshll.u32 %s2, 4
      %s161 = int_to_ptr.hbm [resolvable:$true] %s160
      %163 = dma.vmem_to_hbm [thread:$0]  %s159, 16, %s161, [#allocation5]
    $region21: #{tpu_custom_call.1} parent=1 // pred_fallthru
      _
    // Predicated region
    $region22: #{tpu_custom_call.1} parent=1 // pred_check
      _
    $region23: #{tpu_custom_call.1} parent=1 // pred_check_branch
      %165 = sbr.rel (0) target = $region25
    $region24: #{tpu_custom_call.1} parent=1 // pred_region
      %167 = vsyncadd [#allocation7], 0
      %s169 = sshll.u32 [#allocation6], 4
      %s170 = int_to_ptr.vmem [resolvable:$true] %s169
      %s171 = sshll.u32 %s3, 4
      %s172 = int_to_ptr.hbm [resolvable:$true] %s171
      %174 = dma.vmem_to_hbm [thread:$0]  %s170, 16, %s172, [#allocation7]
    $region25: #{tpu_custom_call.1} parent=1 // pred_fallthru
      _
    // Predicated region
    $region26: #{tpu_custom_call.1} parent=1 // pred_check
      _
    $region27: #{tpu_custom_call.1} parent=1 // pred_check_branch
      %176 = sbr.rel (0) target = $region29
    $region28: #{tpu_custom_call.1} parent=1 // pred_region
      %178 = dma.done [#allocation5], 16
    $region29: #{tpu_custom_call.1} parent=1 // pred_fallthru
      _
    // Predicated region
    $region30: #{tpu_custom_call.1} parent=1 // pred_check
      _
    $region31: #{tpu_custom_call.1} parent=1 // pred_check_branch
      %180 = sbr.rel (0) target = $region33
    $region32: #{tpu_custom_call.1} parent=1 // pred_region
      %182 = dma.done [#allocation7], 16
    $region33: #{tpu_custom_call.1} parent=1 // pred_fallthru
      _
    %183 = vsyncpa [#allocation5], 1
    %184 = vsyncpa [#allocation7], 1

</llo_original>
